<compile_context>
chip_gen: v5e
topology: v5e:2x2
jax: 0.10.0
libtpu: 0.0.40
codegen_flags: <defaults>
</compile_context>

<pallas_src>
import jax
import jax.numpy as jnp
from jax.experimental import pallas as pl
from jax.experimental.pallas import tpu as pltpu


def _make_kernel(size_deck: int, inv_count: float):
    """Build the kernel, closing over static size_deck and 1/(B*D)."""
    D = size_deck

    def kernel(x_ref, w1_ref, b1_ref, wf_ref, bf_ref, out_ref):
        # Whole-batch compute in a single invocation (no grid, no scratch).
        x = x_ref[...]                                                   # (B, D)
        h = jnp.dot(x, w1_ref[...], preferred_element_type=jnp.float32)  # (B, H) f32 acc
        h = jnp.maximum(h + b1_ref[...], 0.0)                            # f32 ReLU (VPU)
        h = h.astype(wf_ref.dtype)                                       # bf16 for 2nd matmul
        # Fused advantage|value head: one MXU pass, one bias add.
        y = jnp.dot(h, wf_ref[...], preferred_element_type=jnp.float32) + bf_ref[...]
        adv = y[:, :D]           # (B, D)  advantage head
        val = y[:, D:D + 1]      # (B, 1)  value head
        # Global (batch-and-feature-wide) mean, matching torch's x1.mean().
        adv_mean = jnp.sum(adv, keepdims=True) * inv_count               # (1,1) f32
        out_ref[...] = (val + (adv - adv_mean)).astype(out_ref.dtype)

    return kernel


def dueling_dqn_forward(x, params, *, compute_dtype=jnp.bfloat16):
    """x: (B, size_deck) float32. params: (in,out) weights / (1,out) biases.

    NOTE: with compute_dtype=bfloat16 the matmul operands are cast to bf16
    (f32 accumulation), so results differ from the f32 PyTorch reference by
    ~1e-2 relative; pass compute_dtype=jnp.float32 for exact-math.
    """
    B, D = x.shape
    w1, b1 = params["w1"], params["b1"]
    w2, b2 = params["w2"], params["b2"]
    w3, b3 = params["w3"], params["b3"]
    H = w1.shape[1]

    # Fuse advantage (H,D) and value (H,1) heads into one (H, D+1) matmul,
    # and fold both biases into a single (1, D+1) f32 vector.
    wf = jnp.concatenate([w2, w3], axis=1)                       # (H, D+1)
    bf = jnp.concatenate([b2, b3], axis=1).astype(jnp.float32)   # (1, D+1)

    # bf16 matmul operands (halved DMA), f32 biases / accumulation / epilogue.
    xc = x.astype(compute_dtype)
    w1c = w1.astype(compute_dtype)
    wfc = wf.astype(compute_dtype)
    b1f = b1.astype(jnp.float32)

    inv_count = 1.0 / float(B * D)        # compile-time constant for the global mean
    kernel = _make_kernel(D, inv_count)

    def _nbytes(shape, dtype):
        n = 1
        for s in shape:
            n *= s
        return n * jnp.dtype(dtype).itemsize

    out_bytes = _nbytes((B, D), x.dtype)
    in_bytes = (_nbytes((B, D), compute_dtype)       # x
                + _nbytes((D, H), compute_dtype)     # W1
                + _nbytes((1, H), jnp.float32)       # b1
                + _nbytes((H, D + 1), compute_dtype) # fused W2|W3
                + _nbytes((1, D + 1), jnp.float32))  # fused b2|b3
    cost = pl.CostEstimate(
        flops=2 * B * (D * H + H * (D + 1)),
        transcendentals=0,
        bytes_accessed=in_bytes + out_bytes,
    )

    # Single-shot kernel: whole batch + intermediates must fit comfortably in VMEM.
    vmem_needed = (in_bytes + out_bytes
                   + _nbytes((B, H), jnp.float32)        # h
                   + _nbytes((B, D + 1), jnp.float32))   # y
    assert vmem_needed < 32 * 1024 * 1024, (
        "batch too large for the single-shot dueling-DQN kernel; tile the batch")

    # No grid / no BlockSpecs: full arrays are staged into VMEM once and the
    # kernel runs as a single step (removes all per-grid-step overhead).
    return pl.pallas_call(
        kernel,
        out_shape=jax.ShapeDtypeStruct((B, D), x.dtype),
        cost_estimate=cost,
    )(xc, w1c, b1f, wfc, bf)


def init_params(key, size_deck, layer_size=128, dtype=jnp.float32):
    """Deterministic PyTorch-style init: U(-1/sqrt(fan_in), 1/sqrt(fan_in))."""
    ks = jax.random.split(key, 6)

    def lin(kw, kb, fan_in, fan_out):
        bound = 1.0 / jnp.sqrt(jnp.asarray(fan_in, dtype))
        w = jax.random.uniform(kw, (fan_in, fan_out), dtype, -bound, bound)
        b = jax.random.uniform(kb, (1, fan_out), dtype, -bound, bound)
        return w, b

    w1, b1 = lin(ks[0], ks[1], size_deck, layer_size)
    w2, b2 = lin(ks[2], ks[3], layer_size, size_deck)
    w3, b3 = lin(ks[4], ks[5], layer_size, 1)
    return dict(w1=w1, b1=b1, w2=w2, b2=b2, w3=w3, b3=b3)


def reference_forward(x, p):
    h = jnp.maximum(x @ p["w1"] + p["b1"], 0.0)
    adv = h @ p["w2"] + p["b2"]
    val = h @ p["w3"] + p["b3"]
    return val + (adv - jnp.mean(adv))


if __name__ == "__main__":
    key = jax.random.PRNGKey(0)
    size_deck = 16
    layer_size = 128
    batch = 64

    k_par, k_x = jax.random.split(key)
    params = init_params(k_par, size_deck, layer_size)
    x = jax.random.normal(k_x, (batch, size_deck), dtype=jnp.float32)

    ref = reference_forward(x, params)

    # Exact-math check: f32 operands through the same single-shot kernel.
    out_f32 = dueling_dqn_forward(x, params, compute_dtype=jnp.float32)
    out_f32 = jax.block_until_ready(out_f32)
    assert out_f32.shape == (batch, size_deck)
    assert jnp.allclose(out_f32, ref, atol=1e-5, rtol=1e-5)

    # Performance path: bf16 matmul operands, f32 accumulation / epilogue.
    out_bf16 = dueling_dqn_forward(x, params, compute_dtype=jnp.bfloat16)
    out_bf16 = jax.block_until_ready(out_bf16)
    assert out_bf16.shape == (batch, size_deck)
    assert jnp.allclose(out_bf16, ref, atol=5e-2, rtol=5e-2)

    print("KERNEL_OK")
</pallas_src>

<mosaic_0001>
module attributes {stable_mosaic.version = 11 : i64} {
  func.func @kernel(%arg0: memref<64x16xf32, #tpu.memory_space<vmem>>, %arg1: memref<16x128xf32, #tpu.memory_space<vmem>>, %arg2: memref<1x128xf32, #tpu.memory_space<vmem>>, %arg3: memref<128x17xf32, #tpu.memory_space<vmem>>, %arg4: memref<1x17xf32, #tpu.memory_space<vmem>>, %arg5: memref<64x16xf32, #tpu.memory_space<vmem>>) attributes {dimension_semantics = [], scalar_prefetch = 0 : i64, scratch_operands = 0 : i64, tpu.core_type = #tpu.core_type<tc>} {
    %c0 = arith.constant 0 : index
    %c0_0 = arith.constant 0 : index
    %0 = vector.load %arg0[%c0, %c0_0] : memref<64x16xf32, #tpu.memory_space<vmem>>, vector<64x16xf32>
    %c0_1 = arith.constant 0 : index
    %c0_2 = arith.constant 0 : index
    %1 = vector.load %arg1[%c0_1, %c0_2] : memref<16x128xf32, #tpu.memory_space<vmem>>, vector<16x128xf32>
    %cst = arith.constant dense<0.000000e+00> : vector<64x128xf32>
    %2 = tpu.matmul %0, %1, %cst {dimension_numbers = #tpu.dot_dimension_numbers<[1], [0], [0], [1], [0, 0, 1, 1], [], []>} : vector<64x16xf32>, vector<16x128xf32>, vector<64x128xf32> -> vector<64x128xf32>
    %c0_3 = arith.constant 0 : index
    %c0_4 = arith.constant 0 : index
    %3 = vector.load %arg2[%c0_3, %c0_4] : memref<1x128xf32, #tpu.memory_space<vmem>>, vector<1x128xf32>
    %4 = vector.broadcast %3 : vector<1x128xf32> to vector<64x128xf32>
    %5 = arith.addf %2, %4 : vector<64x128xf32>
    %cst_5 = arith.constant 0.000000e+00 : f32
    %6 = vector.broadcast %cst_5 : f32 to vector<64x128xf32>
    %7 = arith.maximumf %5, %6 : vector<64x128xf32>
    %c0_6 = arith.constant 0 : index
    %c0_7 = arith.constant 0 : index
    %8 = vector.load %arg3[%c0_6, %c0_7] : memref<128x17xf32, #tpu.memory_space<vmem>>, vector<128x17xf32>
    %cst_8 = arith.constant dense<0.000000e+00> : vector<64x17xf32>
    %9 = tpu.matmul %7, %8, %cst_8 {dimension_numbers = #tpu.dot_dimension_numbers<[1], [0], [0], [1], [0, 0, 1, 1], [], []>} : vector<64x128xf32>, vector<128x17xf32>, vector<64x17xf32> -> vector<64x17xf32>
    %c0_9 = arith.constant 0 : index
    %c0_10 = arith.constant 0 : index
    %10 = vector.load %arg4[%c0_9, %c0_10] : memref<1x17xf32, #tpu.memory_space<vmem>>, vector<1x17xf32>
    %11 = vector.broadcast %10 : vector<1x17xf32> to vector<64x17xf32>
    %12 = arith.addf %9, %11 : vector<64x17xf32>
    %13 = vector.extract_strided_slice %12 {offsets = [0, 0], sizes = [64, 16], strides = [1, 1]} : vector<64x17xf32> to vector<64x16xf32>
    %14 = vector.extract_strided_slice %12 {offsets = [0, 16], sizes = [64, 1], strides = [1, 1]} : vector<64x17xf32> to vector<64x1xf32>
    %15 = vector.shape_cast %13 : vector<64x16xf32> to vector<1x64x16xf32>
    %cst_11 = arith.constant dense<0.000000e+00> : vector<1xf32>
    %16 = vector.multi_reduction <add>, %15, %cst_11 [1, 2] : vector<1x64x16xf32> to vector<1xf32>
    %17 = vector.shape_cast %16 : vector<1xf32> to vector<1x1x1xf32>
    %18 = vector.extract %17[0, 0, 0] : f32 from vector<1x1x1xf32>
    %19 = vector.broadcast %18 : f32 to vector<1x1xf32>
    %cst_12 = arith.constant 9.765625E-4 : f32
    %20 = vector.broadcast %cst_12 : f32 to vector<1x1xf32>
    %21 = arith.mulf %19, %20 : vector<1x1xf32>
    %22 = vector.broadcast %21 : vector<1x1xf32> to vector<64x16xf32>
    %23 = arith.subf %13, %22 : vector<64x16xf32>
    %24 = vector.broadcast %14 : vector<64x1xf32> to vector<64x16xf32>
    %25 = arith.addf %24, %23 : vector<64x16xf32>
    %c0_13 = arith.constant 0 : index
    %c0_14 = arith.constant 0 : index
    %26 = vector.load %arg5[%c0_13, %c0_14] : memref<64x16xf32, #tpu.memory_space<vmem>>, vector<64x16xf32>
    tpu.vector_store %arg5[%c0_13, %c0_14], %25 {strides = array<i32>} : memref<64x16xf32, #tpu.memory_space<vmem>>, vector<64x16xf32>,
    return
  }
}

</mosaic_0001>

<llo_original>
// kernel: tpu_custom_call.1
$region0: #{tpu_custom_call.1}
  #allocation0 [shape = 'u32[]', space=smem, size = 0x4, offset = 0x4, fixed_abs, tag = 'smem constant byte address 0x4 - core index']
  #allocation1 [shape = 'u32[72,128]{1,0:T(1,128)}', space=vmem, size = 0x9000, scoped, tag = 'internal scratch']
  %s0 = inlined_call_operand.vmem [shape: f32[64,16], index: 0, kind: input, shape index: {}]
  %s1 = inlined_call_operand.vmem [shape: f32[16,128], index: 1, kind: input, shape index: {}]
  %s2 = inlined_call_operand.vmem [shape: f32[1,128], index: 2, kind: input, shape index: {}]
  %s3 = inlined_call_operand.vmem [shape: f32[128,17], index: 3, kind: input, shape index: {}]
  %s4 = inlined_call_operand.vmem [shape: f32[1,17], index: 4, kind: input, shape index: {}]
  %s5 = inlined_call_operand.vmem [shape: f32[64,16], index: 5, kind: output, shape index: {}]
  %s6 = sld [smem:[#allocation0]]
  $region30: #{tpu_custom_call.1} parent=0
    _
  %s8 = ssub.s32 1, %s6
  %s9 = scalar_select 0, %s8, %s6
  // Predicated region
  $region2: #{tpu_custom_call.1} parent=0 // pred_check
    _
  $region3: #{tpu_custom_call.1} parent=0 // pred_check_branch
    %11 = sbr.rel (0) target = $region5
  $region4: #{tpu_custom_call.1} parent=0 // pred_region
    _
  $region5: #{tpu_custom_call.1} parent=0 // pred_fallthru
    _
  // Predicated region
  $region6: #{tpu_custom_call.1} parent=0 // pred_check
    _
  $region7: #{tpu_custom_call.1} parent=0 // pred_check_branch
    %13 = sbr.rel (0) target = $region9
  $region8: #{tpu_custom_call.1} parent=0 // pred_region
    _
  $region9: #{tpu_custom_call.1} parent=0 // pred_fallthru
    _
  // Predicated region
  $region10: #{tpu_custom_call.1} parent=0 // pred_check
    _
  $region11: #{tpu_custom_call.1} parent=0 // pred_check_branch
    %15 = sbr.rel (0) target = $region13
  $region12: #{tpu_custom_call.1} parent=0 // pred_region
    _
  $region13: #{tpu_custom_call.1} parent=0 // pred_fallthru
    _
  // Predicated region
  $region14: #{tpu_custom_call.1} parent=0 // pred_check
    _
  $region15: #{tpu_custom_call.1} parent=0 // pred_check_branch
    %17 = sbr.rel (0) target = $region17
  $region16: #{tpu_custom_call.1} parent=0 // pred_region
    _
  $region17: #{tpu_custom_call.1} parent=0 // pred_fallthru
    _
  // Predicated region
  $region18: #{tpu_custom_call.1} parent=0 // pred_check
    _
  $region19: #{tpu_custom_call.1} parent=0 // pred_check_branch
    %19 = sbr.rel (0) target = $region21
  $region20: #{tpu_custom_call.1} parent=0 // pred_region
    _
  $region21: #{tpu_custom_call.1} parent=0 // pred_fallthru
    _
  %v20 = vld [vmem:[%s0] sm:$0xff]
  %v21 = vld [vmem:[%s0 + $0x8] sm:$0xff]
  %v22 = vld [vmem:[%s0 + $0x10] sm:$0xff]
  %v23 = vld [vmem:[%s0 + $0x18] sm:$0xff]
  %v24 = vld [vmem:[%s0 + $0x20] sm:$0xff]
  %v25 = vld [vmem:[%s0 + $0x28] sm:$0xff]
  %v26 = vld [vmem:[%s0 + $0x30] sm:$0xff]
  %v27 = vld [vmem:[%s0 + $0x38] sm:$0xff]
  %v28 = vld [vmem:[%s1] sm:$0xff]
  %v29 = vld [vmem:[%s1 + $0x8] sm:$0xff]
  %v30 = vld [vmem:[%s2] sm:$0x1]
  %v32 = vperm.slane %v30, 0
  %vm34 = vcmask 130048
  %v36 = vsel %vm34, %v20, 0
  %v39 = vsel %vm34, %v21, 0
  %v42 = vsel %vm34, %v22, 0
  %v45 = vsel %vm34, %v23, 0
  %v48 = vsel %vm34, %v24, 0
  %v51 = vsel %vm34, %v25, 0
  %v54 = vsel %vm34, %v26, 0
  %v57 = vsel %vm34, %v27, 0
  %59 = vmatpush.msra.mxu0 0.0
  %60 = vmatpush.msra.mxu0 0.0
  %61 = vmatpush.msra.mxu0 0.0
  %62 = vmatpush.msra.mxu0 0.0
  %63 = vmatpush.msra.mxu0 0.0
  %64 = vmatpush.msra.mxu0 0.0
  %65 = vmatpush.msra.mxu0 0.0
  %66 = vmatpush.msra.mxu0 0.0
  %67 = vmatpush.msra.mxu0 0.0
  %68 = vmatpush.msra.mxu0 0.0
  %69 = vmatpush.msra.mxu0 0.0
  %70 = vmatpush.msra.mxu0 0.0
  %71 = vmatpush.msra.mxu0 0.0
  %72 = vmatpush.msra.mxu0 0.0
  %73 = vmatpush.msra.mxu0 %v29
  %74 = vmatpush.msra.mxu0 %v28
  %75 = vmatmul.f32.gmra.mxu0 %v36
  %v76 = vpop.f32.mrf.mxu0
  %v77 = vadd.f32 %v32, %v76
  %78 = vmatmul.f32.gmra.mxu0 %v39
  %v79 = vpop.f32.mrf.mxu0
  %v80 = vadd.f32 %v32, %v79
  %81 = vmatmul.f32.gmra.mxu0 %v42
  %v82 = vpop.f32.mrf.mxu0
  %v83 = vadd.f32 %v32, %v82
  %84 = vmatmul.f32.gmra.mxu0 %v45
  %v85 = vpop.f32.mrf.mxu0
  %v86 = vadd.f32 %v32, %v85
  %87 = vmatmul.f32.gmra.mxu0 %v48
  %v88 = vpop.f32.mrf.mxu0
  %v89 = vadd.f32 %v32, %v88
  %90 = vmatmul.f32.gmra.mxu0 %v51
  %v91 = vpop.f32.mrf.mxu0
  %v92 = vadd.f32 %v32, %v91
  %93 = vmatmul.f32.gmra.mxu0 %v54
  %v94 = vpop.f32.mrf.mxu0
  %v95 = vadd.f32 %v32, %v94
  %96 = vmatmul.f32.gmra.mxu0 %v57
  %v97 = vpop.f32.mrf.mxu0
  %v98 = vadd.f32 %v32, %v97
  %99 = vdwg.mxu0
  %v100 = vmax.f32 %v77, 0.0
  %v101 = vmax.f32 %v80, 0.0
  %v102 = vmax.f32 %v83, 0.0
  %v103 = vmax.f32 %v86, 0.0
  %v104 = vmax.f32 %v89, 0.0
  %v105 = vmax.f32 %v92, 0.0
  %v106 = vmax.f32 %v95, 0.0
  %v107 = vmax.f32 %v98, 0.0
  %v108 = vld [vmem:[%s3] sm:$0xff]
  %v109 = vld [vmem:[%s3 + $0x8] sm:$0xff]
  %v110 = vld [vmem:[%s3 + $0x10] sm:$0xff]
  %v111 = vld [vmem:[%s3 + $0x18] sm:$0xff]
  %v112 = vld [vmem:[%s3 + $0x20] sm:$0xff]
  %v113 = vld [vmem:[%s3 + $0x28] sm:$0xff]
  %v114 = vld [vmem:[%s3 + $0x30] sm:$0xff]
  %v115 = vld [vmem:[%s3 + $0x38] sm:$0xff]
  %v116 = vld [vmem:[%s3 + $0x40] sm:$0xff]
  %v117 = vld [vmem:[%s3 + $0x48] sm:$0xff]
  %v118 = vld [vmem:[%s3 + $0x50] sm:$0xff]
  %v119 = vld [vmem:[%s3 + $0x58] sm:$0xff]
  %v120 = vld [vmem:[%s3 + $0x60] sm:$0xff]
  %v121 = vld [vmem:[%s3 + $0x68] sm:$0xff]
  %v122 = vld [vmem:[%s3 + $0x70] sm:$0xff]
  %v123 = vld [vmem:[%s3 + $0x78] sm:$0xff]
  %v124 = vld [vmem:[%s4] sm:$0x1]
  %v126 = vperm.slane %v124, 0
  %128 = vmatpush.msra.mxu0 %v123
  %129 = vmatpush.msra.mxu0 %v122
  %130 = vmatpush.msra.mxu0 %v121
  %131 = vmatpush.msra.mxu0 %v120
  %132 = vmatpush.msra.mxu0 %v119
  %133 = vmatpush.msra.mxu0 %v118
  %134 = vmatpush.msra.mxu0 %v117
  %135 = vmatpush.msra.mxu0 %v116
  %136 = vmatpush.msra.mxu0 %v115
  %137 = vmatpush.msra.mxu0 %v114
  %138 = vmatpush.msra.mxu0 %v113
  %139 = vmatpush.msra.mxu0 %v112
  %140 = vmatpush.msra.mxu0 %v111
  %141 = vmatpush.msra.mxu0 %v110
  %142 = vmatpush.msra.mxu0 %v109
  %143 = vmatpush.msra.mxu0 %v108
  %144 = vmatmul.f32.gmra.mxu0 %v100
  %v145 = vpop.f32.mrf.mxu0
  %v146 = vadd.f32 %v126, %v145
  %147 = vmatmul.f32.gmra.mxu0 %v101
  %v148 = vpop.f32.mrf.mxu0
  %v149 = vadd.f32 %v126, %v148
  %150 = vmatmul.f32.gmra.mxu0 %v102
  %v151 = vpop.f32.mrf.mxu0
  %v152 = vadd.f32 %v126, %v151
  %153 = vmatmul.f32.gmra.mxu0 %v103
  %v154 = vpop.f32.mrf.mxu0
  %v155 = vadd.f32 %v126, %v154
  %156 = vmatmul.f32.gmra.mxu0 %v104
  %v157 = vpop.f32.mrf.mxu0
  %v158 = vadd.f32 %v126, %v157
  %159 = vmatmul.f32.gmra.mxu0 %v105
  %v160 = vpop.f32.mrf.mxu0
  %v161 = vadd.f32 %v126, %v160
  %162 = vmatmul.f32.gmra.mxu0 %v106
  %v163 = vpop.f32.mrf.mxu0
  %v164 = vadd.f32 %v126, %v163
  %165 = vmatmul.f32.gmra.mxu0 %v107
  %v166 = vpop.f32.mrf.mxu0
  %v167 = vadd.f32 %v126, %v166
  %168 = vdwg.mxu0
  %v169 = vsel %vm34, %v146, 0.0
  %v170 = vsel %vm34, %v149, 0.0
  %v171 = vadd.f32 %v169, %v170
  %v172 = vsel %vm34, %v152, 0.0
  %v173 = vadd.f32 %v171, %v172
  %v174 = vsel %vm34, %v155, 0.0
  %v175 = vadd.f32 %v173, %v174
  %v176 = vsel %vm34, %v158, 0.0
  %v177 = vadd.f32 %v175, %v176
  %v178 = vsel %vm34, %v161, 0.0
  %v179 = vadd.f32 %v177, %v178
  %v180 = vsel %vm34, %v164, 0.0
  %v181 = vadd.f32 %v179, %v180
  %v182 = vsel %vm34, %v167, 0.0
  %v183 = vadd.f32 %v181, %v182
  %184 = vadd.xlane.f32.xlu0 %v183
  %v185 = vpop.xlane.xlu0 %184
  %v186 = vrot.slane %v185, 4
  %v187 = vadd.f32 %v185, %v186
  %v188 = vrot.slane %v187, 2
  %v189 = vadd.f32 %v187, %v188
  %v190 = vrot.slane %v189, 1
  %v191 = vadd.f32 %v189, %v190
  %s192 = vtos %v191
  %v193 = vstv %s192
  %v194 = vmul.f32 %v193, 0.0009765625
  %v195 = vsub.f32 %v146, %v194
  %v196 = vsub.f32 %v149, %v194
  %v197 = vsub.f32 %v152, %v194
  %v198 = vsub.f32 %v155, %v194
  %v199 = vsub.f32 %v158, %v194
  %v200 = vsub.f32 %v161, %v194
  %v201 = vsub.f32 %v164, %v194
  %v202 = vsub.f32 %v167, %v194
  %204 = vset.pattern.permute.xlu0 16
  %205 = vperm.xlu0 %204, %v146
  %v206 = vpop.permute.xlu0 %205
  %209 = vset.pattern.permute.xlu0 16
  %210 = vperm.xlu0 %209, %v149
  %v211 = vpop.permute.xlu0 %210
  %214 = vset.pattern.permute.xlu0 16
  %215 = vperm.xlu0 %214, %v152
  %v216 = vpop.permute.xlu0 %215
  %219 = vset.pattern.permute.xlu0 16
  %220 = vperm.xlu0 %219, %v155
  %v221 = vpop.permute.xlu0 %220
  %224 = vset.pattern.permute.xlu0 16
  %225 = vperm.xlu0 %224, %v158
  %v226 = vpop.permute.xlu0 %225
  %229 = vset.pattern.permute.xlu0 16
  %230 = vperm.xlu0 %229, %v161
  %v231 = vpop.permute.xlu0 %230
  %234 = vset.pattern.permute.xlu0 16
  %235 = vperm.xlu0 %234, %v164
  %v236 = vpop.permute.xlu0 %235
  %239 = vset.pattern.permute.xlu0 16
  %240 = vperm.xlu0 %239, %v167
  %v241 = vpop.permute.xlu0 %240
  %v243 = vadd.f32 %v206, %v195
  %v244 = vadd.f32 %v211, %v196
  %v245 = vadd.f32 %v216, %v197
  %v246 = vadd.f32 %v221, %v198
  %v247 = vadd.f32 %v226, %v199
  %v248 = vadd.f32 %v231, %v200
  %v249 = vadd.f32 %v236, %v201
  %v250 = vadd.f32 %v241, %v202
  %251 = vst.msk [vmem:[%s5] sm:$0xff] %vm34, %v243
  %252 = vst.msk [vmem:[%s5 + $0x8] sm:$0xff] %vm34, %v244
  %253 = vst.msk [vmem:[%s5 + $0x10] sm:$0xff] %vm34, %v245
  %254 = vst.msk [vmem:[%s5 + $0x18] sm:$0xff] %vm34, %v246
  %255 = vst.msk [vmem:[%s5 + $0x20] sm:$0xff] %vm34, %v247
  %256 = vst.msk [vmem:[%s5 + $0x28] sm:$0xff] %vm34, %v248
  %257 = vst.msk [vmem:[%s5 + $0x30] sm:$0xff] %vm34, %v249
  %258 = vst.msk [vmem:[%s5 + $0x38] sm:$0xff] %vm34, %v250
  // Predicated region
  $region22: #{tpu_custom_call.1} parent=0 // pred_check
    _
  $region23: #{tpu_custom_call.1} parent=0 // pred_check_branch
    %260 = sbr.rel (0) target = $region25
  $region24: #{tpu_custom_call.1} parent=0 // pred_region
    _
  $region25: #{tpu_custom_call.1} parent=0 // pred_fallthru
    _
  // Predicated region
  $region26: #{tpu_custom_call.1} parent=0 // pred_check
    _
  $region27: #{tpu_custom_call.1} parent=0 // pred_check_branch
    %262 = sbr.rel (0) target = $region29
  $region28: #{tpu_custom_call.1} parent=0 // pred_region
    _
  $region29: #{tpu_custom_call.1} parent=0 // pred_fallthru
    _

</llo_original>
